<compile_context>
chip_gen: v7x
topology: tpu7x:2x2x1
jax: 0.10.0
libtpu: 0.0.40
codegen_flags: <defaults>
</compile_context>

<pallas_src>
import functools

import jax
import jax.numpy as jnp
from jax.experimental import pallas as pl
from jax.experimental.pallas import tpu as pltpu

_MiB = 1024 * 1024
_TM_CAP = 256          # M-tile cap (also used when budgeting N/K tiles)
_M_ALIGN = 16          # bf16 min tile is (16, 128)
_LANE_ALIGN = 128


def _round_up(x, m):
    return ((x + m - 1) // m) * m


@functools.lru_cache(maxsize=None)
def _vmem_capacity_bytes():
    """Physical VMEM per TensorCore; conservative (v7x, 64 MiB) fallback."""
    cap = 64 * _MiB
    try:
        info = pltpu.get_tpu_info()
        v = getattr(info, "vmem_capacity_bytes", None)
        if v:
            cap = int(v)
    except Exception:
        pass
    return cap


@functools.lru_cache(maxsize=None)
def _vmem_budget_bytes():
    # Explicit double-buffered working set budget: 3/8 of physical VMEM
    # (24 MiB on v7x, 48 MiB on v5e/v6e).
    return _vmem_capacity_bytes() * 3 // 8


@functools.lru_cache(maxsize=None)
def _vmem_limit_bytes():
    # Raise the scoped-VMEM limit (v5e default is only 16 MiB) but leave
    # headroom below physical (v7x has just 64 MiB per TensorCore).
    return int(min(_vmem_capacity_bytes() * 3 // 4, 96 * _MiB))


def _choose_tile(dim_min, align, cap):
    """Pick (tile, padded_dim) for a dim already padded to `align`.

    Prefers few blocks and minimal extra padding (no rounding a 2176-wide dim
    up to a multiple of a fixed 512 tile)."""
    cap = max(align, (cap // align) * align)
    if dim_min <= cap:
        return dim_min, dim_min
    best = None
    t = align
    while t <= cap:
        padded = _round_up(dim_min, t)
        key = (padded // t, padded)          # fewest blocks, then least padding
        if best is None or key < best[0]:
            best = (key, t, padded)
        t += align
    return best[1], best[2]


def _working_set_bytes(tm, tn, tk):
    x_b = 2 * tm * tk * 2        # bf16 x tile, double-buffered
    w_b = 2 * tk * tn * 2        # bf16 w tile, double-buffered
    o_b = 2 * tm * tn * 4        # f32 output tile (doubles as accumulator)
    bias_b = 2 * 8 * tn * 4
    return x_b + w_b + o_b + bias_b


def _select_dim_tiles(d_min_n, d_min_k, budget):
    """Choose (tn, n_pad, tk, k_pad). Collapsed K is preferred when it fits."""
    candidates = [
        (2048, None), (1024, None), (512, None),      # None => collapse K
        (2048, 2048), (1024, 2048), (1024, 1024),
        (512, 1024), (512, 512), (256, 512),
        (256, 256), (128, 256), (128, 128),
    ]
    chosen = None
    for tn_cap, tk_cap in candidates:
        tk_cap = d_min_k if tk_cap is None else tk_cap
        tn, n_pad = _choose_tile(d_min_n, _LANE_ALIGN, tn_cap)
        tk, k_pad = _choose_tile(d_min_k, _LANE_ALIGN, tk_cap)
        if _working_set_bytes(_TM_CAP, tn, tk) <= budget:
            chosen = (tn, n_pad, tk, k_pad)
            break
    if chosen is None:
        tn, n_pad = _choose_tile(d_min_n, _LANE_ALIGN, _LANE_ALIGN)
        tk, k_pad = _choose_tile(d_min_k, _LANE_ALIGN, _LANE_ALIGN)
        chosen = (tn, n_pad, tk, k_pad)
    tn, n_pad, tk, k_pad = chosen
    # Keep >=2 N blocks when possible so both v7x TensorCores get work even if
    # batch collapses to a single M block.
    if n_pad // tn < 2 and n_pad >= 2 * _LANE_ALIGN:
        half = max(_LANE_ALIGN, (tn // 2 // _LANE_ALIGN) * _LANE_ALIGN)
        tn, n_pad = _choose_tile(d_min_n, _LANE_ALIGN, half)
    return tn, n_pad, tk, k_pad


# ---------------------------------------------------------------------------
# Kernels
# ---------------------------------------------------------------------------
def _linear_kernel_single_k(x_ref, w_ref, b_ref, o_ref):
    # One streamed pass over K: o = bias + x @ w, f32 accumulation on the MXU.
    o_ref[...] = b_ref[...] + jax.lax.dot_general(
        x_ref[...], w_ref[...],
        dimension_numbers=(((1,), (0,)), ((), ())),
        preferred_element_type=jnp.float32,
    )


def _linear_kernel_multi_k(x_ref, w_ref, b_ref, o_ref):
    # Output block (f32) is the accumulator: its block index is constant
    # across the innermost ("arbitrary") K axis.
    k = pl.program_id(2)
    part = jax.lax.dot_general(
        x_ref[...], w_ref[...],
        dimension_numbers=(((1,), (0,)), ((), ())),
        preferred_element_type=jnp.float32,
    )

    @pl.when(k == 0)
    def _():
        o_ref[...] = b_ref[...] + part      # init with broadcast bias

    @pl.when(k > 0)
    def _():
        o_ref[...] += part


# ---------------------------------------------------------------------------
# Wrappers
# ---------------------------------------------------------------------------
def prepare_adaptation_params(weight, bias, *, force_caps=None):
    """One-time parameter prep (do this at load time, not per forward call).

    weight: (out, in) PyTorch layout, f32.  Returns pre-transposed (in, out),
    padded, bf16 weight; padded f32 bias; and the chosen N/K tiles.
    """
    d_out, d_in = weight.shape
    assert bias.shape == (d_out,)
    d_min_n = _round_up(d_out, _LANE_ALIGN)
    d_min_k = _round_up(d_in, _LANE_ALIGN)

    if force_caps is not None:
        tn_cap, tk_cap = force_caps
        tn, n_pad = _choose_tile(d_min_n, _LANE_ALIGN, tn_cap)
        tk, k_pad = _choose_tile(d_min_k, _LANE_ALIGN, tk_cap)
    else:
        tn, n_pad, tk, k_pad = _select_dim_tiles(d_min_n, d_min_k,
                                                 _vmem_budget_bytes())

    w_t = jnp.pad(weight.T.astype(jnp.bfloat16),
                  ((0, k_pad - d_in), (0, n_pad - d_out)))          # (K, N) bf16
    b_p = jnp.pad(bias.astype(jnp.float32), (0, n_pad - d_out)).reshape(1, n_pad)
    return {"w": w_t, "b": b_p, "d_out": d_out, "d_in": d_in, "tn": tn, "tk": tk}


@functools.partial(jax.jit, static_argnames=("tm", "tn", "tk"))
def _padded_forward(x_p, w_p, b_p, *, tm, tn, tk):
    mp, kp = x_p.shape
    _, n_pad = w_p.shape
    kk = kp // tk
    cp_kwargs = dict(vmem_limit_bytes=_vmem_limit_bytes())

    if kk == 1:
        # Collapsed K: no accumulator loop, no init/finalize branches.
        return pl.pallas_call(
            _linear_kernel_single_k,
            out_shape=jax.ShapeDtypeStruct((mp, n_pad), jnp.float32),
            grid=(mp // tm, n_pad // tn),
            in_specs=[
                pl.BlockSpec((tm, kp), lambda i, j: (i, 0)),   # x (bf16)
                pl.BlockSpec((kp, tn), lambda i, j: (0, j)),   # w (bf16, (K,N))
                pl.BlockSpec((1, tn), lambda i, j: (0, j)),    # bias (f32)
            ],
            out_specs=pl.BlockSpec((tm, tn), lambda i, j: (i, j)),
            compiler_params=pltpu.CompilerParams(
                dimension_semantics=("parallel", "parallel"), **cp_kwargs),
        )(x_p, w_p, b_p)

    return pl.pallas_call(
        _linear_kernel_multi_k,
        out_shape=jax.ShapeDtypeStruct((mp, n_pad), jnp.float32),
        grid=(mp // tm, n_pad // tn, kk),
        in_specs=[
            pl.BlockSpec((tm, tk), lambda i, j, k: (i, k)),
            pl.BlockSpec((tk, tn), lambda i, j, k: (k, j)),
            pl.BlockSpec((1, tn), lambda i, j, k: (0, j)),
        ],
        out_specs=pl.BlockSpec((tm, tn), lambda i, j, k: (i, j)),
        compiler_params=pltpu.CompilerParams(
            dimension_semantics=("parallel", "parallel", "arbitrary"),
            **cp_kwargs),
    )(x_p, w_p, b_p)


def adaptation_forward(x, params, *, tm_cap=_TM_CAP):
    """Pallas equivalent of `adaptation.forward`: y = x @ W.T + b."""
    batch, d_in = x.shape
    assert d_in == params["d_in"]
    w_p, b_p = params["w"], params["b"]
    kp, _ = w_p.shape

    m_min = _round_up(batch, _M_ALIGN)
    tm, mp = _choose_tile(m_min, _M_ALIGN, max(_M_ALIGN, (tm_cap // _M_ALIGN) * _M_ALIGN))
    x_p = jnp.pad(x.astype(jnp.bfloat16), ((0, mp - batch), (0, kp - d_in)))

    out = _padded_forward(x_p, w_p, b_p, tm=tm, tn=params["tn"], tk=params["tk"])
    return out[:batch, :params["d_out"]]


# ---------------------------------------------------------------------------
# Test
# ---------------------------------------------------------------------------
if __name__ == "__main__":
    key = jax.random.PRNGKey(0)

    def ref_bf16(x, w, b):
        # Same numerics as the kernel: bf16 operands, f32 MXU accum, f32 bias.
        return jnp.dot(x.astype(jnp.bfloat16), w.astype(jnp.bfloat16).T,
                       preferred_element_type=jnp.float32) + b[None, :]

    def run_case(k, batch, d, *, identity_w, force_caps=None, tm_cap=_TM_CAP):
        kx, kw, kb = jax.random.split(k, 3)
        x = jax.random.normal(kx, (batch, d), dtype=jnp.float32)
        if identity_w:
            weight = jnp.eye(d, dtype=jnp.float32)        # module's __init__
        else:
            weight = jax.random.normal(kw, (d, d), dtype=jnp.float32) * 0.05
        bound = 1.0 / (d ** 0.5)
        bias = jax.random.uniform(kb, (d,), minval=-bound, maxval=bound,
                                  dtype=jnp.float32)

        params = prepare_adaptation_params(weight, bias, force_caps=force_caps)
        out = jax.block_until_ready(adaptation_forward(x, params, tm_cap=tm_cap))
        assert out.shape == (batch, d)

        ref = ref_bf16(x, weight, bias)
        assert jnp.allclose(out, ref, atol=1e-4, rtol=1e-4), \
            float(jnp.max(jnp.abs(out - ref)))
        if identity_w:
            # bf16 identity is exact; only x rounds -> tight-ish vs f32 module.
            exact = x @ weight.T + bias[None, :]
            assert jnp.allclose(out, exact, atol=2e-2, rtol=2e-2)

    k1, k2, k3 = jax.random.split(key, 3)
    # 1) module-default config (identity weight), single-block fast path.
    run_case(k1, batch=8, d=32, identity_w=True)
    # 2) multi-block M/N/K accumulation path (forced small tiles).
    run_case(k2, batch=48, d=256, identity_w=False,
             force_caps=(128, 128), tm_cap=16)
    # 3) unaligned batch / feature dims -> padding + slice-back path.
    run_case(k3, batch=10, d=200, identity_w=False)

    print("KERNEL_OK")
</pallas_src>

<mosaic_0001>
module attributes {stable_mosaic.version = 11 : i64} {
  func.func @_linear_kernel_single_k(%arg0: i32, %arg1: i32, %arg2: memref<16x128xbf16, #tpu.memory_space<vmem>>, %arg3: memref<128x128xbf16, #tpu.memory_space<vmem>>, %arg4: memref<1x128xf32, #tpu.memory_space<vmem>>, %arg5: memref<16x128xf32, #tpu.memory_space<vmem>>) attributes {dimension_semantics = [#tpu.dimension_semantics<parallel>, #tpu.dimension_semantics<parallel>], iteration_bounds = array<i64: 1, 1>, scalar_prefetch = 0 : i64, scratch_operands = 0 : i64, tpu.core_type = #tpu.core_type<tc>, window_params = [{transform_indices = @transform_0, window_bounds = array<i64: 16, 128>}, {transform_indices = @transform_1, window_bounds = array<i64: 128, 128>}, {transform_indices = @transform_2, window_bounds = array<i64: 1, 128>}, {transform_indices = @transform_3, window_bounds = array<i64: 16, 128>}]} {
    %c0 = arith.constant 0 : index
    %c0_0 = arith.constant 0 : index
    %0 = vector.load %arg4[%c0, %c0_0] : memref<1x128xf32, #tpu.memory_space<vmem>>, vector<1x128xf32>
    %c0_1 = arith.constant 0 : index
    %c0_2 = arith.constant 0 : index
    %1 = vector.load %arg2[%c0_1, %c0_2] : memref<16x128xbf16, #tpu.memory_space<vmem>>, vector<16x128xbf16>
    %c0_3 = arith.constant 0 : index
    %c0_4 = arith.constant 0 : index
    %2 = vector.load %arg3[%c0_3, %c0_4] : memref<128x128xbf16, #tpu.memory_space<vmem>>, vector<128x128xbf16>
    %cst = arith.constant dense<0.000000e+00> : vector<16x128xf32>
    %3 = tpu.matmul %1, %2, %cst {dimension_numbers = #tpu.dot_dimension_numbers<[1], [0], [0], [1], [0, 0, 1, 1], [], []>} : vector<16x128xbf16>, vector<128x128xbf16>, vector<16x128xf32> -> vector<16x128xf32>
    %4 = vector.broadcast %0 : vector<1x128xf32> to vector<16x128xf32>
    %5 = arith.addf %4, %3 : vector<16x128xf32>
    %c0_5 = arith.constant 0 : index
    %c0_6 = arith.constant 0 : index
    %6 = vector.load %arg5[%c0_5, %c0_6] : memref<16x128xf32, #tpu.memory_space<vmem>>, vector<16x128xf32>
    tpu.vector_store %arg5[%c0_5, %c0_6], %5 {strides = array<i32>} : memref<16x128xf32, #tpu.memory_space<vmem>>, vector<16x128xf32>,
    return
  }
  func.func @transform_0(%arg0: i32, %arg1: i32) -> (i32, i32) {
    %c0_i32 = arith.constant 0 : i32
    %c0_i32_0 = arith.constant 0 : i32
    return %arg0, %c0_i32 : i32, i32
  }
  func.func @transform_1(%arg0: i32, %arg1: i32) -> (i32, i32) {
    %c0_i32 = arith.constant 0 : i32
    %c0_i32_0 = arith.constant 0 : i32
    return %c0_i32, %arg1 : i32, i32
  }
  func.func @transform_2(%arg0: i32, %arg1: i32) -> (i32, i32) {
    %c0_i32 = arith.constant 0 : i32
    %c0_i32_0 = arith.constant 0 : i32
    return %c0_i32, %arg1 : i32, i32
  }
  func.func @transform_3(%arg0: i32, %arg1: i32) -> (i32, i32) {
    %c0_i32 = arith.constant 0 : i32
    return %arg0, %arg1 : i32, i32
  }
}

</mosaic_0001>

<llo_original>
// kernel: _padded_forward.1
$region0: #{_padded_forward.1}
  #allocation0 [shape = 'u32[]', space=smem, size = 0x4, offset = 0x4, fixed_abs, tag = 'smem constant byte address 0x4 - core index']
  #allocation1 [shape = 'u32[144,128]{1,0:T(1,128)}', space=vmem, size = 0x12000, scoped, tag = 'internal scratch']
  %s0 = inlined_call_operand.hbm [shape: bf16[16,128], index: 0, kind: input, shape index: {}]
  %s1 = inlined_call_operand.hbm [shape: bf16[128,128], index: 1, kind: input, shape index: {}]
  %s2 = inlined_call_operand.vmem [shape: f32[1,128], index: 2, kind: input, shape index: {}]
  %s3 = inlined_call_operand.hbm [shape: f32[16,128], index: 3, kind: output, shape index: {}]
  %s4 = sld [smem:[#allocation0]]
  $region30: #{_padded_forward.1} parent=0
    _
  %s6 = ssub.s32 1, %s4
  %s7 = scalar_select 0, %s6, %s4
  $region1: #{_padded_forward.1} parent=0
    #allocation2 [shape = 'u8[4096]{0}', space=vmem, size = 0x1000, scoped, tag = 'input window, operand 0, single buffered']
    #allocation3 [shape = 's32[1]{0}', space=sflag, size = 0x4, scoped, tag = 'scoped memory for _padded_forward.1']
    #allocation4 [shape = 's32[1]{0}', space=sflag, size = 0x4, scoped, tag = 'scoped memory for _padded_forward.1']
    #allocation5 [shape = 'u8[32768]{0}', space=vmem, size = 0x8000, scoped, tag = 'input window, operand 1, single buffered']
    #allocation6 [shape = 's32[1]{0}', space=sflag, size = 0x4, scoped, tag = 'scoped memory for _padded_forward.1']
    #allocation7 [shape = 'u8[8192]{0}', space=vmem, size = 0x2000, scoped, tag = 'output window, operand 0, single buffered']
    %8 = vsyncpa [#allocation3], 0
    %9 = vsyncpa [#allocation6], 0
    %10 = vsyncpa [#allocation4], 0
    // Predicated region
    $region2: #{_padded_forward.1} parent=1 // pred_check
      _
    $region3: #{_padded_forward.1} parent=1 // pred_check_branch
      %12 = sbr.rel (0) target = $region5
    $region4: #{_padded_forward.1} parent=1 // pred_region
      %s14 = ssub.s32 128, 128
      %15 = vsyncadd [#allocation3], %s14
      %s16 = sshll.u32 [#allocation2], 4
      %s17 = int_to_ptr.vmem [resolvable:$true] %s16
      %22 = dma.hbm_to_vmem [thread:$0]  %s0, 128, %s17, [#allocation3], 64, 64, 4
    $region5: #{_padded_forward.1} parent=1 // pred_fallthru
      _
    // Predicated region
    $region6: #{_padded_forward.1} parent=1 // pred_check
      _
    $region7: #{_padded_forward.1} parent=1 // pred_check_branch
      %24 = sbr.rel (0) target = $region9
    $region8: #{_padded_forward.1} parent=1 // pred_region
      %s26 = ssub.s32 1024, 1024
      %27 = vsyncadd [#allocation6], %s26
      %s28 = sshll.u32 [#allocation5], 4
      %s29 = int_to_ptr.vmem [resolvable:$true] %s28
      %34 = dma.hbm_to_vmem [thread:$0]  %s1, 1024, %s29, [#allocation6], 64, 64, 4
    $region9: #{_padded_forward.1} parent=1 // pred_fallthru
      _
    // Predicated region
    $region10: #{_padded_forward.1} parent=1 // pred_check
      _
    $region11: #{_padded_forward.1} parent=1 // pred_check_branch
      %36 = sbr.rel (0) target = $region13
    $region12: #{_padded_forward.1} parent=1 // pred_region
      _
    $region13: #{_padded_forward.1} parent=1 // pred_fallthru
      _
    // Predicated region
    $region14: #{_padded_forward.1} parent=1 // pred_check
      _
    $region15: #{_padded_forward.1} parent=1 // pred_check_branch
      %38 = sbr.rel (0) target = $region17
    $region16: #{_padded_forward.1} parent=1 // pred_region
      %39 = dma.done [#allocation3], 128
    $region17: #{_padded_forward.1} parent=1 // pred_fallthru
      _
    // Predicated region
    $region18: #{_padded_forward.1} parent=1 // pred_check
      _
    $region19: #{_padded_forward.1} parent=1 // pred_check_branch
      %41 = sbr.rel (0) target = $region21
    $region20: #{_padded_forward.1} parent=1 // pred_region
      %42 = dma.done [#allocation6], 1024
    $region21: #{_padded_forward.1} parent=1 // pred_fallthru
      _
    %v44 = vld [vmem:[%s2] sm:$0x1]
    %v45 = vld [vmem:[#allocation2] sm:$0xf]
    %v46 = vld [vmem:[#allocation2 + $0x4] sm:$0xf]
    %v47 = vld [vmem:[#allocation5] sm:$0xf]
    %v48 = vld [vmem:[#allocation5 + $0x4] sm:$0xf]
    %v49 = vld [vmem:[#allocation5 + $0x8] sm:$0xf]
    %v50 = vld [vmem:[#allocation5 + $0xc] sm:$0xf]
    %v51 = vld [vmem:[#allocation5 + $0x10] sm:$0xf]
    %v52 = vld [vmem:[#allocation5 + $0x14] sm:$0xf]
    %v53 = vld [vmem:[#allocation5 + $0x18] sm:$0xf]
    %v54 = vld [vmem:[#allocation5 + $0x1c] sm:$0xf]
    %v55 = vld [vmem:[#allocation5 + $0x20] sm:$0xf]
    %v56 = vld [vmem:[#allocation5 + $0x24] sm:$0xf]
    %v57 = vld [vmem:[#allocation5 + $0x28] sm:$0xf]
    %v58 = vld [vmem:[#allocation5 + $0x2c] sm:$0xf]
    %v59 = vld [vmem:[#allocation5 + $0x30] sm:$0xf]
    %v60 = vld [vmem:[#allocation5 + $0x34] sm:$0xf]
    %v61 = vld [vmem:[#allocation5 + $0x38] sm:$0xf]
    %v62 = vld [vmem:[#allocation5 + $0x3c] sm:$0xf]
    %v65 = vunpack.c.l.b16 %v45
    %v66 = vunpack.c.l.b16 %v46
    %v67 = vpack.c.b16 %v66, %v65
    %v85 = vunpack.c.l.b16 %v47
    %v86 = vunpack.c.l.b16 %v48
    %v87 = vunpack.c.l.b16 %v49
    %v88 = vunpack.c.l.b16 %v50
    %v89 = vunpack.c.l.b16 %v51
    %v90 = vunpack.c.l.b16 %v52
    %v91 = vunpack.c.l.b16 %v53
    %v92 = vunpack.c.l.b16 %v54
    %v93 = vunpack.c.l.b16 %v55
    %v94 = vunpack.c.l.b16 %v56
    %v95 = vunpack.c.l.b16 %v57
    %v96 = vunpack.c.l.b16 %v58
    %v97 = vunpack.c.l.b16 %v59
    %v98 = vunpack.c.l.b16 %v60
    %v99 = vunpack.c.l.b16 %v61
    %v100 = vunpack.c.l.b16 %v62
    %v101 = vpack.c.b16 %v86, %v85
    %v102 = vpack.c.b16 %v88, %v87
    %v103 = vpack.c.b16 %v90, %v89
    %v104 = vpack.c.b16 %v92, %v91
    %v105 = vpack.c.b16 %v94, %v93
    %v106 = vpack.c.b16 %v96, %v95
    %v107 = vpack.c.b16 %v98, %v97
    %v108 = vpack.c.b16 %v100, %v99
    %117 = vmatprep.subr.bf16.mxu0 0
    %118 = vmatpush1.bf16.msra.mxu0 %v101
    %119 = vmatprep.subr.bf16.mxu0 0
    %120 = vmatpush1.bf16.msra.mxu0 %v102
    %121 = vmatprep.subr.bf16.mxu0 0
    %122 = vmatpush1.bf16.msra.mxu0 %v103
    %123 = vmatprep.subr.bf16.mxu0 0
    %124 = vmatpush1.bf16.msra.mxu0 %v104
    %125 = vmatprep.subr.bf16.mxu0 0
    %126 = vmatpush1.bf16.msra.mxu0 %v105
    %127 = vmatprep.subr.bf16.mxu0 0
    %128 = vmatpush1.bf16.msra.mxu0 %v106
    %129 = vmatprep.subr.bf16.mxu0 0
    %130 = vmatpush1.bf16.msra.mxu0 %v107
    %131 = vmatprep.subr.bf16.mxu0 0
    %132 = vmatpush1.bf16.msra.mxu0 %v108
    %133 = vmatprep.subr.bf16.mxu0 0
    %134 = vmatpush1.bf16.msra.mxu0 0
    %135 = vmatprep.subr.bf16.mxu0 0
    %136 = vmatpush1.bf16.msra.mxu0 0
    %137 = vmatprep.subr.bf16.mxu0 0
    %138 = vmatpush1.bf16.msra.mxu0 0
    %139 = vmatprep.subr.bf16.mxu0 0
    %140 = vmatpush1.bf16.msra.mxu0 0
    %141 = vmatprep.subr.bf16.mxu0 0
    %142 = vmatpush1.bf16.msra.mxu0 0
    %143 = vmatprep.subr.bf16.mxu0 0
    %144 = vmatpush1.bf16.msra.mxu0 0
    %145 = vmatprep.subr.bf16.mxu0 0
    %146 = vmatpush1.bf16.msra.mxu0 0
    %147 = vmatprep.subr.bf16.mxu0 0
    %148 = vmatpush1.bf16.msra.mxu0 0
    %149 = vmatprep.mubr.bf16.mxu0 0
    %150 = vmatmul.mubr.bf16.gmra.mrb[0].mxu0 %v67
    %v151 = vpop.f32.mrb[0].mxu0
    %v152 = vadd.f32 0.0, %v151
    %v153 = vpop.f32.mrb[0].mxu0
    %v154 = vpop.f32.mrb[0].mxu0
    %v155 = vadd.f32 0.0, %v154
    %v156 = vpop.f32.mrb[0].mxu0
    %157 = vdwg.mxu0
    %v159 = vlaneseq
    %v160 = vshrl.u32 %v159, 7
    %v161 = vsub.s32 0, %v160
    %v162 = vrot.slane %v44, %v161
    %v164 = vadd.f32 %v162, %v152
    %v165 = vadd.f32 %v162, %v155
    %166 = vst [vmem:[#allocation7] sm:$0xff] %v164
    %167 = vst [vmem:[#allocation7 + $0x8] sm:$0xff] %v165
    // Predicated region
    $region22: #{_padded_forward.1} parent=1 // pred_check
      _
    $region23: #{_padded_forward.1} parent=1 // pred_check_branch
      %169 = sbr.rel (0) target = $region25
    $region24: #{_padded_forward.1} parent=1 // pred_region
      %s171 = ssub.s32 256, 256
      %172 = vsyncadd [#allocation4], %s171
      %s173 = sshll.u32 [#allocation7], 4
      %s174 = int_to_ptr.vmem [resolvable:$true] %s173
      %179 = dma.vmem_to_hbm [thread:$0]  %s174, 256, %s3, [#allocation4], 128, 128, 8
    $region25: #{_padded_forward.1} parent=1 // pred_fallthru
      _
    // Predicated region
    $region26: #{_padded_forward.1} parent=1 // pred_check
      _
    $region27: #{_padded_forward.1} parent=1 // pred_check_branch
      %181 = sbr.rel (0) target = $region29
    $region28: #{_padded_forward.1} parent=1 // pred_region
      %182 = dma.done [#allocation4], 256
    $region29: #{_padded_forward.1} parent=1 // pred_fallthru
      _
    %183 = vsyncpa [#allocation3], 1
    %184 = vsyncpa [#allocation6], 1
    %185 = vsyncpa [#allocation4], 1

</llo_original>
